<compile_context>
chip_gen: v7x
topology: tpu7x:2x2x1
jax: 0.10.0
libtpu: 0.0.40
codegen_flags: <defaults>
</compile_context>

<pallas_src>
import numpy as np
import jax
import jax.numpy as jnp
from jax.experimental import pallas as pl
from jax.experimental.pallas import tpu as pltpu


# ----------------------------------------------------------------------------
# Filter / matrix construction (host-side numpy, tiny)
# ----------------------------------------------------------------------------

def _binomial_1d(filt_size: int) -> np.ndarray:
    table = {
        1: [1.0],
        2: [1.0, 1.0],
        3: [1.0, 2.0, 1.0],
        4: [1.0, 3.0, 3.0, 1.0],
        5: [1.0, 4.0, 6.0, 4.0, 1.0],
        6: [1.0, 5.0, 10.0, 10.0, 5.0, 1.0],
        7: [1.0, 6.0, 15.0, 20.0, 15.0, 6.0, 1.0],
    }
    a = np.array(table[filt_size], dtype=np.float64)
    # 2D filter is (a x a)/sum = (a/sum(a)) outer (a/sum(a))  -> separable
    return a / a.sum()


def _fold_matrix(n: int, filt1d: np.ndarray, stride: int,
                 pad_lo: int, pad_hi: int, pad_mode: str):
    """Blur + stride + padding folded into one (n_out, n) matrix.

    M[i, src] accumulates filt1d[k] where src is the unpadded source index of
    padded position stride*i + k (reflect / replicate), or is skipped for
    zero padding.
    """
    k = filt1d.shape[0]
    n_pad = n + pad_lo + pad_hi
    n_out = (n_pad - k) // stride + 1
    m = np.zeros((n_out, n), dtype=np.float64)
    for i in range(n_out):
        for j in range(k):
            u = stride * i + j - pad_lo            # unpadded coordinate
            if 0 <= u < n:
                src = u
            elif pad_mode == "reflect":            # PyTorch ReflectionPad2d
                src = -u if u < 0 else 2 * (n - 1) - u
            elif pad_mode == "replicate":          # PyTorch ReplicationPad2d
                src = min(max(u, 0), n - 1)
            else:                                  # zero padding
                continue
            m[i, src] += filt1d[j]
    return m.astype(np.float32), n_out


def _round_up(x: int, m: int) -> int:
    return ((x + m - 1) // m) * m


def _choose_bc(nc: int, plane_in_bytes: int, plane_out_bytes: int,
               budget: int = 12 * 1024 * 1024) -> int:
    """Channel planes per grid step, bounded by a conservative VMEM budget."""
    per_plane = 2 * (plane_in_bytes + plane_out_bytes)   # double-buffered in+out
    bc_max = max(1, min(64, budget // max(per_plane, 1)))
    if nc >= 2:
        # keep at least 2 grid blocks so both v7x TensorCores get work
        bc_max = max(1, min(bc_max, (nc + 1) // 2))
    bc_max = min(bc_max, nc)
    best_div = 1
    for cand in range(bc_max, 0, -1):
        if nc % cand == 0:
            best_div = cand
            break
    if best_div * 2 >= bc_max:       # divisor close enough to the cap -> no padding
        return best_div
    return bc_max                    # otherwise accept padding the channel axis


# ----------------------------------------------------------------------------
# Kernel
# ----------------------------------------------------------------------------

def _downsample_kernel(a_ref, b_ref, x_ref, o_ref):
    # a_ref: (Ho, H)   vertical blur+stride (+padding) matrix, shared
    # b_ref: (W, Wo)   horizontal blur+stride (+padding) matrix, shared
    # x_ref: (BC, H, W)   block of channel planes
    # o_ref: (BC, Ho, Wo) block of output planes
    bc = x_ref.shape[0]
    ho, h = a_ref.shape
    w, wo = b_ref.shape

    x = x_ref[...]                                              # (BC, H, W)
    a = jnp.broadcast_to(a_ref[...], (bc, ho, h))               # (BC, Ho, H)
    b = jnp.broadcast_to(b_ref[...], (bc, w, wo))               # (BC, W, Wo)

    # vertical blur + stride:  (BC, Ho, H) x (BC, H, W) -> (BC, Ho, W)
    t = jnp.einsum("boh,bhw->bow", a, x,
                   preferred_element_type=jnp.float32)
    # horizontal blur + stride: (BC, Ho, W) x (BC, W, Wo) -> (BC, Ho, Wo)
    y = jnp.einsum("bow,bwv->bov", t, b,
                   preferred_element_type=jnp.float32)
    o_ref[...] = y.astype(o_ref.dtype)


# ----------------------------------------------------------------------------
# Wrapper (equivalent of Downsample.forward on an NCHW tensor)
# ----------------------------------------------------------------------------

def downsample(x: jax.Array, *, pad_type: str = "reflect", filt_size: int = 3,
               stride: int = 2, pad_off: int = 0) -> jax.Array:
    N, C, H, W = x.shape

    if filt_size == 1 and pad_off == 0:
        # pure subsampling, no padding / filtering (matches the module)
        return x[:, :, ::stride, ::stride]

    mode = {"refl": "reflect", "reflect": "reflect",
            "repl": "replicate", "replicate": "replicate",
            "zero": "zero"}[pad_type]

    pad_lo = int(1.0 * (filt_size - 1) / 2) + pad_off
    pad_hi = int(np.ceil(1.0 * (filt_size - 1) / 2)) + pad_off

    f1d = _binomial_1d(filt_size)
    a_np, Ho = _fold_matrix(H, f1d, stride, pad_lo, pad_hi, mode)   # (Ho, H)
    b_np, Wo = _fold_matrix(W, f1d, stride, pad_lo, pad_hi, mode)   # (Wo, W)
    A = jnp.asarray(a_np, dtype=x.dtype)                            # (Ho, H)
    B = jnp.asarray(b_np.T, dtype=x.dtype)                          # (W, Wo)

    nc = N * C
    x_flat = x.reshape(nc, H, W)

    itemsize = jnp.dtype(x.dtype).itemsize
    plane_in = _round_up(H, 8) * _round_up(W, 128) * itemsize
    plane_out = _round_up(Ho, 8) * _round_up(Wo, 128) * itemsize
    bc = _choose_bc(nc, plane_in, plane_out)

    nc_pad = _round_up(nc, bc)
    if nc_pad != nc:
        x_flat = jnp.pad(x_flat, ((0, nc_pad - nc), (0, 0), (0, 0)))

    out_flat = pl.pallas_call(
        _downsample_kernel,
        out_shape=jax.ShapeDtypeStruct((nc_pad, Ho, Wo), x.dtype),
        grid_spec=pltpu.PrefetchScalarGridSpec(
            num_scalar_prefetch=0,
            grid=(nc_pad // bc,),
            in_specs=[
                pl.BlockSpec((Ho, H), lambda i: (0, 0)),        # A (shared)
                pl.BlockSpec((W, Wo), lambda i: (0, 0)),        # B (shared)
                pl.BlockSpec((bc, H, W), lambda i: (i, 0, 0)),  # x block
            ],
            out_specs=pl.BlockSpec((bc, Ho, Wo), lambda i: (i, 0, 0)),
        ),
        compiler_params=pltpu.CompilerParams(
            dimension_semantics=("parallel",),
            vmem_limit_bytes=32 * 1024 * 1024,
        ),
    )(A, B, x_flat)

    if nc_pad != nc:
        out_flat = out_flat[:nc]
    return out_flat.reshape(N, C, Ho, Wo)


# ----------------------------------------------------------------------------
# Pure-JAX reference (pad + depthwise conv) for validation
# ----------------------------------------------------------------------------

def _reference(x, *, pad_type="reflect", filt_size=3, stride=2, pad_off=0):
    C = x.shape[1]
    pad_lo = int(1.0 * (filt_size - 1) / 2) + pad_off
    pad_hi = int(np.ceil(1.0 * (filt_size - 1) / 2)) + pad_off
    mode = {"refl": "reflect", "reflect": "reflect",
            "repl": "edge", "replicate": "edge",
            "zero": "constant"}[pad_type]
    xp = jnp.pad(x, ((0, 0), (0, 0), (pad_lo, pad_hi), (pad_lo, pad_hi)),
                 mode=mode)
    f1 = _binomial_1d(filt_size)
    f2 = jnp.asarray(np.outer(f1, f1), dtype=x.dtype)               # (k, k)
    filt = jnp.broadcast_to(f2[None, None], (C, 1, filt_size, filt_size))
    return jax.lax.conv_general_dilated(
        xp, filt, window_strides=(stride, stride), padding="VALID",
        feature_group_count=C,
        dimension_numbers=("NCHW", "OIHW", "NCHW"))


if __name__ == "__main__":
    key = jax.random.PRNGKey(0)
    x = jax.random.normal(key, (2, 4, 16, 16), dtype=jnp.float32)   # NCHW

    # Downsample(pad_type='reflect', filt_size=3, stride=2, channels=4)
    out = jax.block_until_ready(downsample(x))
    assert out.shape == (2, 4, 8, 8), out.shape
    ref = jax.block_until_ready(_reference(x))
    np.testing.assert_allclose(np.asarray(out), np.asarray(ref),
                               rtol=1e-5, atol=1e-5)

    # also validate that the folded padding reproduces replicate / zero modes
    for pt in ("replicate", "zero"):
        o = jax.block_until_ready(downsample(x, pad_type=pt))
        r = jax.block_until_ready(_reference(x, pad_type=pt))
        np.testing.assert_allclose(np.asarray(o), np.asarray(r),
                                   rtol=1e-5, atol=1e-5)

    print("KERNEL_OK")
</pallas_src>

<mosaic_0001>
module attributes {stable_mosaic.version = 11 : i64} {
  func.func @_downsample_kernel(%arg0: i32, %arg1: memref<8x16xf32, #tpu.memory_space<vmem>>, %arg2: memref<16x8xf32, #tpu.memory_space<vmem>>, %arg3: memref<4x16x16xf32, #tpu.memory_space<vmem>>, %arg4: memref<4x8x8xf32, #tpu.memory_space<vmem>>) attributes {dimension_semantics = [#tpu.dimension_semantics<parallel>], iteration_bounds = array<i64: 2>, scalar_prefetch = 0 : i64, scratch_operands = 0 : i64, tpu.core_type = #tpu.core_type<tc>, window_params = [{pipeline_mode = #tpu.pipeline_mode<synchronous>, transform_indices = @transform_0, window_bounds = array<i64: 8, 16>}, {pipeline_mode = #tpu.pipeline_mode<synchronous>, transform_indices = @transform_1, window_bounds = array<i64: 16, 8>}, {transform_indices = @transform_2, window_bounds = array<i64: 4, 16, 16>}, {transform_indices = @transform_3, window_bounds = array<i64: 4, 8, 8>}]} {
    %c0 = arith.constant 0 : index
    %c0_0 = arith.constant 0 : index
    %c0_1 = arith.constant 0 : index
    %0 = vector.load %arg3[%c0, %c0_0, %c0_1] : memref<4x16x16xf32, #tpu.memory_space<vmem>>, vector<4x16x16xf32>
    %c0_2 = arith.constant 0 : index
    %c0_3 = arith.constant 0 : index
    %1 = vector.load %arg1[%c0_2, %c0_3] : memref<8x16xf32, #tpu.memory_space<vmem>>, vector<8x16xf32>
    %2 = vector.shape_cast %1 : vector<8x16xf32> to vector<1x8x16xf32>
    %3 = vector.broadcast %2 : vector<1x8x16xf32> to vector<4x8x16xf32>
    %c0_4 = arith.constant 0 : index
    %c0_5 = arith.constant 0 : index
    %4 = vector.load %arg2[%c0_4, %c0_5] : memref<16x8xf32, #tpu.memory_space<vmem>>, vector<16x8xf32>
    %5 = vector.shape_cast %4 : vector<16x8xf32> to vector<1x16x8xf32>
    %6 = vector.broadcast %5 : vector<1x16x8xf32> to vector<4x16x8xf32>
    "tpu.trace_start"() <{level = 10 : i32, message = "boh,bhw->bow"}> : () -> ()
    %cst = arith.constant dense<0.000000e+00> : vector<4x8x16xf32>
    %7 = tpu.matmul %3, %0, %cst {dimension_numbers = #tpu.dot_dimension_numbers<[2], [1], [1], [2], [0, 0, 0, 1, 1, 2], [0], [0]>} : vector<4x8x16xf32>, vector<4x16x16xf32>, vector<4x8x16xf32> -> vector<4x8x16xf32>
    "tpu.trace_stop"() : () -> ()
    "tpu.trace_start"() <{level = 10 : i32, message = "bow,bwv->bov"}> : () -> ()
    %cst_6 = arith.constant dense<0.000000e+00> : vector<4x8x8xf32>
    %8 = tpu.matmul %7, %6, %cst_6 {dimension_numbers = #tpu.dot_dimension_numbers<[2], [1], [1], [2], [0, 0, 0, 1, 1, 2], [0], [0]>} : vector<4x8x16xf32>, vector<4x16x8xf32>, vector<4x8x8xf32> -> vector<4x8x8xf32>
    "tpu.trace_stop"() : () -> ()
    %c0_7 = arith.constant 0 : index
    %c0_8 = arith.constant 0 : index
    %c0_9 = arith.constant 0 : index
    %9 = vector.load %arg4[%c0_7, %c0_8, %c0_9] : memref<4x8x8xf32, #tpu.memory_space<vmem>>, vector<4x8x8xf32>
    tpu.vector_store %arg4[%c0_7, %c0_8, %c0_9], %8 {strides = array<i32>} : memref<4x8x8xf32, #tpu.memory_space<vmem>>, vector<4x8x8xf32>,
    return
  }
  func.func @transform_0(%arg0: i32) -> (i32, i32) {
    %c0_i32 = arith.constant 0 : i32
    %c0_i32_0 = arith.constant 0 : i32
    %c0_i32_1 = arith.constant 0 : i32
    return %c0_i32, %c0_i32_0 : i32, i32
  }
  func.func @transform_1(%arg0: i32) -> (i32, i32) {
    %c0_i32 = arith.constant 0 : i32
    %c0_i32_0 = arith.constant 0 : i32
    %c0_i32_1 = arith.constant 0 : i32
    return %c0_i32, %c0_i32_0 : i32, i32
  }
  func.func @transform_2(%arg0: i32) -> (i32, i32, i32) {
    %c0_i32 = arith.constant 0 : i32
    %c0_i32_0 = arith.constant 0 : i32
    %c0_i32_1 = arith.constant 0 : i32
    return %arg0, %c0_i32, %c0_i32_0 : i32, i32, i32
  }
  func.func @transform_3(%arg0: i32) -> (i32, i32, i32) {
    %c0_i32 = arith.constant 0 : i32
    %c0_i32_0 = arith.constant 0 : i32
    %c0_i32_1 = arith.constant 0 : i32
    return %arg0, %c0_i32, %c0_i32_0 : i32, i32, i32
  }
}

</mosaic_0001>

<llo_original>
// kernel: tpu_custom_call.1
$region0: #{tpu_custom_call.1}
  #allocation0 [shape = 'u32[]', space=smem, size = 0x4, offset = 0x4, fixed_abs, tag = 'smem constant byte address 0x4 - core index']
  #allocation1 [shape = 'u32[144,128]{1,0:T(1,128)}', space=vmem, size = 0x12000, scoped, tag = 'internal scratch']
  %s0 = inlined_call_operand.vmem [shape: f32[8,16], index: 0, kind: input, shape index: {}]
  %s1 = inlined_call_operand.vmem [shape: f32[16,8], index: 1, kind: input, shape index: {}]
  %s2 = inlined_call_operand.hbm [shape: f32[8,16,16], index: 2, kind: input, shape index: {}]
  %s3 = inlined_call_operand.hbm [shape: f32[8,8,8], index: 3, kind: output, shape index: {}]
  %s4 = sld [smem:[#allocation0]]
  $region49: #{tpu_custom_call.1} parent=0
    _
  %s6 = ssub.s32 1, %s4
  %s7 = scalar_select 0, %s6, %s4
  $region1: #{tpu_custom_call.1} parent=0
    #allocation2 [shape = 'u8[65536]{0}', space=vmem, size = 0x10000, scoped, tag = 'input window, operand 2']
    #allocation3 [shape = 's32[2]{0}', space=sflag, size = 0x8, scoped, tag = 'scoped memory for tpu_custom_call.1']
    #allocation4 [shape = 's32[2]{0}', space=sflag, size = 0x8, scoped, tag = 'scoped memory for tpu_custom_call.1']
    #allocation5 [shape = 'u8[32768]{0}', space=vmem, size = 0x8000, scoped, tag = 'output window, operand 0']
    %8 = vsyncpa [#allocation3], 0
    %s9 = scalar_lea.sflag [#allocation3], 1
    %10 = vsyncpa %s9, 0
    %11 = vsyncpa [#allocation4], 0
    %s12 = scalar_lea.sflag [#allocation4], 1
    %13 = vsyncpa %s12, 0
    loop: start=0, step=1, limit=4
    $region2: #{tpu_custom_call.1} parent=1 // loop_pre_header
      _
    $region3: #{tpu_custom_call.1} parent=1 // loop_header
      %s15 = sphi 0, %s19
      %p16 = scmp.ge.s32.totalorder %s15, 4
      %s23 = sphi 0, %s23
      %s25 = sphi 0, %s23
      %s26 = sphi 0, %s25
      %s40 = sphi 0, %s26
      %s44 = sphi 0, %s44
      %s46 = sphi 0, %s44
      %s47 = sphi 0, %s46
      %s61 = sphi 0, %s47
      %s67 = sphi 0, %s69
      %s70 = sphi 0, %s67
      %s71 = sphi 0, %s70
      %s87 = sphi 0, %s71
      %s93 = sphi 0, %s95
      %s96 = sphi 0, %s93
      %s97 = sphi 0, %s96
      %s113 = sphi 0, %s97
    $region4: #{tpu_custom_call.1} parent=1 // loop_header_branch
      %18 = sbr.rel (%p16) target = $region8
    $region5: #{tpu_custom_call.1} parent=1 // loop_body
      %s20 = ssub.s32 %s15, 1
      %s21 = ssub.s32 %s15, 2
      %s22 = sadd.s32 %s15, 1
      %s24 = sadd.s32 %s23, 1
      %p27 = scmp.eq.s32.totalorder %s15, 1
      %p28 = scmp.ne.s32.totalorder %s23, %s25
      %p29 = scmp.eq.s32.totalorder %s15, 0
      %p30 = por %p28, %p29
      %p31 = scmp.ne.s32.totalorder %s23, %s25
      %p32 = scmp.eq.s32.totalorder %s20, 1
      %p33 = por %p31, %p32
      %p34 = scmp.ne.s32.totalorder %s25, %s26
      %p35 = scmp.eq.s32.totalorder %s20, 0
      %p36 = por %p34, %p35
      %p37 = scmp.ne.s32.totalorder %s25, %s26
      %p38 = scmp.eq.s32.totalorder %s21, 1
      %p39 = por %p37, %p38
      %p41 = scmp.ne.s32.totalorder %s26, %s40
      %p42 = scmp.eq.s32.totalorder %s21, 0
      %p43 = por %p41, %p42
      %s45 = sadd.s32 %s44, 1
      %p48 = scmp.eq.s32.totalorder %s15, 1
      %p49 = scmp.ne.s32.totalorder %s44, %s46
      %p50 = scmp.eq.s32.totalorder %s15, 0
      %p51 = por %p49, %p50
      %p52 = scmp.ne.s32.totalorder %s44, %s46
      %p53 = scmp.eq.s32.totalorder %s20, 1
      %p54 = por %p52, %p53
      %p55 = scmp.ne.s32.totalorder %s46, %s47
      %p56 = scmp.eq.s32.totalorder %s20, 0
      %p57 = por %p55, %p56
      %p58 = scmp.ne.s32.totalorder %s46, %s47
      %p59 = scmp.eq.s32.totalorder %s21, 1
      %p60 = por %p58, %p59
      %p62 = scmp.ne.s32.totalorder %s47, %s61
      %p63 = scmp.eq.s32.totalorder %s21, 0
      %p64 = por %p62, %p63
      %s65 = ssub.s32 %s15, %s22
      %p66 = scmp.eq.s32.totalorder %s65, 0
      %s68 = sadd.s32 %s67, 1
      %s69 = scalar_select %p66, %s67, %s68
      %p72 = pneg %p66
      %p73 = scmp.eq.s32.totalorder %s15, 1
      %p74 = por %p72, %p73
      %p75 = scmp.ne.s32.totalorder %s67, %s70
      %p76 = scmp.eq.s32.totalorder %s15, 0
      %p77 = por %p75, %p76
      %p78 = scmp.ne.s32.totalorder %s67, %s70
      %p79 = scmp.eq.s32.totalorder %s20, 1
      %p80 = por %p78, %p79
      %p81 = scmp.ne.s32.totalorder %s70, %s71
      %p82 = scmp.eq.s32.totalorder %s20, 0
      %p83 = por %p81, %p82
      %p84 = scmp.ne.s32.totalorder %s70, %s71
      %p85 = scmp.eq.s32.totalorder %s21, 1
      %p86 = por %p84, %p85
      %p88 = scmp.ne.s32.totalorder %s71, %s87
      %p89 = scmp.eq.s32.totalorder %s21, 0
      %p90 = por %p88, %p89
      %s91 = ssub.s32 %s15, %s22
      %p92 = scmp.eq.s32.totalorder %s91, 0
      %s94 = sadd.s32 %s93, 1
      %s95 = scalar_select %p92, %s93, %s94
      %p98 = pneg %p92
      %p99 = scmp.eq.s32.totalorder %s15, 1
      %p100 = por %p98, %p99
      %p101 = scmp.ne.s32.totalorder %s93, %s96
      %p102 = scmp.eq.s32.totalorder %s15, 0
      %p103 = por %p101, %p102
      %p104 = scmp.ne.s32.totalorder %s93, %s96
      %p105 = scmp.eq.s32.totalorder %s20, 1
      %p106 = por %p104, %p105
      %p107 = scmp.ne.s32.totalorder %s96, %s97
      %p108 = scmp.eq.s32.totalorder %s20, 0
      %p109 = por %p107, %p108
      %p110 = scmp.ne.s32.totalorder %s96, %s97
      %p111 = scmp.eq.s32.totalorder %s21, 1
      %p112 = por %p110, %p111
      %p114 = scmp.ne.s32.totalorder %s97, %s113
      %p115 = scmp.eq.s32.totalorder %s21, 0
      %p116 = por %p114, %p115
      %p117 = scmp.le.s32.totalorder 1, %s15
      %p118 = scmp.lt.s32.totalorder %s15, 3
      %p119 = pnand %p117, %p118
      %p120 = pneg %p119
      // Predicated region
      $region9: #{tpu_custom_call.1} parent=5 // pred_check
        _
      $region10: #{tpu_custom_call.1} parent=5 // pred_check_branch
        %122 = sbr.rel (%p119) target = $region12
      $region11: #{tpu_custom_call.1} parent=5 // pred_region
        %s123 = ssub.s32 %s15, 1
        // Predicated region
        $region13: #{tpu_custom_call.1} parent=11 // pred_check
          %p124 = pneg %p36
        $region14: #{tpu_custom_call.1} parent=11 // pred_check_branch
          %126 = sbr.rel (%p124) target = $region16
        $region15: #{tpu_custom_call.1} parent=11 // pred_region
          _
        $region16: #{tpu_custom_call.1} parent=11 // pred_fallthru
          _
        // Predicated region
        $region17: #{tpu_custom_call.1} parent=11 // pred_check
          %p127 = pneg %p57
        $region18: #{tpu_custom_call.1} parent=11 // pred_check_branch
          %129 = sbr.rel (%p127) target = $region20
        $region19: #{tpu_custom_call.1} parent=11 // pred_region
          _
        $region20: #{tpu_custom_call.1} parent=11 // pred_fallthru
          _
      $region12: #{tpu_custom_call.1} parent=5 // pred_fallthru
        _
      %p130 = scmp.lt.s32.totalorder %s15, 2
      // Predicated region
      $region21: #{tpu_custom_call.1} parent=5 // pred_check
        %p131 = pneg %p130
      $region22: #{tpu_custom_call.1} parent=5 // pred_check_branch
        %133 = sbr.rel (%p131) target = $region24
      $region23: #{tpu_custom_call.1} parent=5 // pred_region
        // Predicated region
        $region25: #{tpu_custom_call.1} parent=23 // pred_check
          %p134 = pneg %p77
        $region26: #{tpu_custom_call.1} parent=23 // pred_check_branch
          %136 = sbr.rel (%p134) target = $region28
        $region27: #{tpu_custom_call.1} parent=23 // pred_region
          %s137 = sand.u32 %s67, 1
          %s138 = scalar_lea.sflag [#allocation3], %s137
          %s139 = sand.u32 %s67, 1
          %s140 = smul.addr %s139, 64
          %s141 = scalar_lea.vmem [#allocation2], %s140
          %s142 = smul.u32 4, %s15
          %s144 = ssub.s32 1024, 1024
          %145 = vsyncadd %s138, %s144
          %s146 = smul.addr %s142, 2
          %s147 = smul.addr %s146, 128
          %s148 = scalar_lea.hbm %s2, %s147
          %s149 = sshll.u32 %s141, 4
          %s150 = int_to_ptr.vmem [resolvable:$true] %s149
          %155 = dma.hbm_to_vmem [thread:$0]  %s148, 1024, %s150, %s138, 128, 128, 8
        $region28: #{tpu_custom_call.1} parent=23 // pred_fallthru
          _
      $region24: #{tpu_custom_call.1} parent=5 // pred_fallthru
        _
      %p156 = scmp.le.s32.totalorder 1, %s15
      %p157 = scmp.lt.s32.totalorder %s15, 3
      %p158 = pnand %p156, %p157
      %p159 = pneg %p158
      // Predicated region
      $region29: #{tpu_custom_call.1} parent=5 // pred_check
        _
      $region30: #{tpu_custom_call.1} parent=5 // pred_check_branch
        %161 = sbr.rel (%p158) target = $region32
      $region31: #{tpu_custom_call.1} parent=5 // pred_region
        %s162 = ssub.s32 %s15, 1
        %s163 = sand.u32 %s70, 1
        %s164 = scalar_lea.sflag [#allocation3], %s163
        %s165 = sand.u32 %s70, 1
        %s166 = smul.addr %s165, 64
        %s167 = scalar_lea.vmem [#allocation2], %s166
        // Predicated region
        $region33: #{tpu_custom_call.1} parent=31 // pred_check
          %p168 = pneg %p83
        $region34: #{tpu_custom_call.1} parent=31 // pred_check_branch
          %170 = sbr.rel (%p168) target = $region36
        $region35: #{tpu_custom_call.1} parent=31 // pred_region
          %171 = dma.done %s164, 1024
        $region36: #{tpu_custom_call.1} parent=31 // pred_fallthru
          _
        %p172 = pneg %p36
        %p173 = pneg %p33
        %p174 = pneg %p57
        %p175 = pneg %p54
        %s176 = sand.u32 %s70, 1
        %s177 = scalar_lea.sflag [#allocation3], %s176
        %s178 = sand.u32 %s70, 1
        %s179 = smul.addr %s178, 64
        %s180 = scalar_lea.vmem [#allocation2], %s179
        %p181 = pneg %p83
        %p182 = pneg %p80
        %p183 = pneg %p109
        %p184 = pneg %p106
        %s185 = sand.u32 %s96, 1
        %s186 = scalar_lea.sflag [#allocation4], %s185
        %s187 = sand.u32 %s96, 1
        %s188 = smul.addr %s187, 32
        %s189 = scalar_lea.vmem [#allocation5], %s188
        %s190 = smul.u32 4, %s20
        %s191 = smul.u32 4, %s20
        %v192 = vld [vmem:[%s167] sm:$0xff]
        %v193 = vld [vmem:[%s167 + $0x8] sm:$0xff]
        %v194 = vld [vmem:[%s167 + $0x10] sm:$0xff]
        %v195 = vld [vmem:[%s167 + $0x18] sm:$0xff]
        %v196 = vld [vmem:[%s167 + $0x20] sm:$0xff]
        %v197 = vld [vmem:[%s167 + $0x28] sm:$0xff]
        %v198 = vld [vmem:[%s167 + $0x30] sm:$0xff]
        %v199 = vld [vmem:[%s167 + $0x38] sm:$0xff]
        %v200 = vld [vmem:[%s0] sm:$0xff]
        %v201 = vld [vmem:[%s1] sm:$0xff]
        %v202 = vld [vmem:[%s1 + $0x8] sm:$0xff]
        %vm203 = vcmask 130048
        %v205 = vsel %vm203, %v200, 0
        %207 = vmatprep.subr.mxu0 0.0
        %208 = vmatpush1.msra.mxu0 %v192
        %209 = vmatprep.subr.mxu0 0.0
        %210 = vmatpush1.msra.mxu0 %v193
        %211 = vmatprep.subr.mxu0 0.0
        %212 = vmatpush1.msra.mxu0 0.0
        %213 = vmatprep.subr.mxu0 0.0
        %214 = vmatpush1.msra.mxu0 0.0
        %215 = vmatprep.subr.mxu0 0.0
        %216 = vmatpush1.msra.mxu0 0.0
        %217 = vmatprep.subr.mxu0 0.0
        %218 = vmatpush1.msra.mxu0 0.0
        %219 = vmatprep.subr.mxu0 0.0
        %220 = vmatpush1.msra.mxu0 0.0
        %221 = vmatprep.subr.mxu0 0.0
        %222 = vmatpush1.msra.mxu0 0.0
        %223 = vmatprep.subr.mxu0 0.0
        %224 = vmatpush1.msra.mxu0 0.0
        %225 = vmatprep.subr.mxu0 0.0
        %226 = vmatpush1.msra.mxu0 0.0
        %227 = vmatprep.subr.mxu0 0.0
        %228 = vmatpush1.msra.mxu0 0.0
        %229 = vmatprep.subr.mxu0 0.0
        %230 = vmatpush1.msra.mxu0 0.0
        %231 = vmatprep.subr.mxu0 0.0
        %232 = vmatpush1.msra.mxu0 0.0
        %233 = vmatprep.subr.mxu0 0.0
        %234 = vmatpush1.msra.mxu0 0.0
        %235 = vmatprep.subr.mxu0 0.0
        %236 = vmatpush1.msra.mxu0 0.0
        %237 = vmatprep.subr.mxu0 0.0
        %238 = vmatpush1.msra.mxu0 0.0
        %239 = vmatprep.subr.mxu0 0.0
        %240 = vmatpush1.msra.mxu0 0.0
        %241 = vmatprep.subr.mxu0 0.0
        %242 = vmatpush1.msra.mxu0 0.0
        %243 = vmatprep.subr.mxu0 0.0
        %244 = vmatpush1.msra.mxu0 0.0
        %245 = vmatprep.subr.mxu0 0.0
        %246 = vmatpush1.msra.mxu0 0.0
        %247 = vmatprep.subr.mxu0 0.0
        %248 = vmatpush1.msra.mxu0 0.0
        %249 = vmatprep.subr.mxu0 0.0
        %250 = vmatpush1.msra.mxu0 0.0
        %251 = vmatprep.subr.mxu0 0.0
        %252 = vmatpush1.msra.mxu0 0.0
        %253 = vmatprep.subr.mxu0 0.0
        %254 = vmatpush1.msra.mxu0 0.0
        %255 = vmatprep.subr.mxu0 0.0
        %256 = vmatpush1.msra.mxu0 0.0
        %257 = vmatprep.subr.mxu0 0.0
        %258 = vmatpush1.msra.mxu0 0.0
        %259 = vmatprep.subr.mxu0 0.0
        %260 = vmatpush1.msra.mxu0 0.0
        %261 = vmatprep.subr.mxu0 0.0
        %262 = vmatpush1.msra.mxu0 0.0
        %263 = vmatprep.subr.mxu0 0.0
        %264 = vmatpush1.msra.mxu0 0.0
        %265 = vmatprep.subr.mxu0 0.0
        %266 = vmatpush1.msra.mxu0 0.0
        %267 = vmatprep.subr.mxu0 0.0
        %268 = vmatpush1.msra.mxu0 0.0
        %269 = vmatprep.subr.mxu0 0.0
        %270 = vmatpush1.msra.mxu0 0.0
        %271 = vmatprep.mubr.f32.mxu0 0.0
        %272 = vmatmul.mubr.f32.gmra.mrb[0].mxu0 %v205
        %v273 = vpop.f32.mrb[0].mxu0
        %v274 = vadd.f32 0.0, %v273
        %v275 = vpop.f32.mrb[0].mxu0
        %276 = vdwg.mxu0
        %277 = vmatprep.subr.mxu0 0.0
        %278 = vmatpush1.msra.mxu0 %v194
        %279 = vmatprep.subr.mxu0 0.0
        %280 = vmatpush1.msra.mxu0 %v195
        %281 = vmatprep.subr.mxu0 0.0
        %282 = vmatpush1.msra.mxu0 0.0
        %283 = vmatprep.subr.mxu0 0.0
        %284 = vmatpush1.msra.mxu0 0.0
        %285 = vmatprep.subr.mxu0 0.0
        %286 = vmatpush1.msra.mxu0 0.0
        %287 = vmatprep.subr.mxu0 0.0
        %288 = vmatpush1.msra.mxu0 0.0
        %289 = vmatprep.subr.mxu0 0.0
        %290 = vmatpush1.msra.mxu0 0.0
        %291 = vmatprep.subr.mxu0 0.0
        %292 = vmatpush1.msra.mxu0 0.0
        %293 = vmatprep.subr.mxu0 0.0
        %294 = vmatpush1.msra.mxu0 0.0
        %295 = vmatprep.subr.mxu0 0.0
        %296 = vmatpush1.msra.mxu0 0.0
        %297 = vmatprep.subr.mxu0 0.0
        %298 = vmatpush1.msra.mxu0 0.0
        %299 = vmatprep.subr.mxu0 0.0
        %300 = vmatpush1.msra.mxu0 0.0
        %301 = vmatprep.subr.mxu0 0.0
        %302 = vmatpush1.msra.mxu0 0.0
        %303 = vmatprep.subr.mxu0 0.0
        %304 = vmatpush1.msra.mxu0 0.0
        %305 = vmatprep.subr.mxu0 0.0
        %306 = vmatpush1.msra.mxu0 0.0
        %307 = vmatprep.subr.mxu0 0.0
        %308 = vmatpush1.msra.mxu0 0.0
        %309 = vmatprep.subr.mxu0 0.0
        %310 = vmatpush1.msra.mxu0 0.0
        %311 = vmatprep.subr.mxu0 0.0
        %312 = vmatpush1.msra.mxu0 0.0
        %313 = vmatprep.subr.mxu0 0.0
        %314 = vmatpush1.msra.mxu0 0.0
        %315 = vmatprep.subr.mxu0 0.0
        %316 = vmatpush1.msra.mxu0 0.0
        %317 = vmatprep.subr.mxu0 0.0
        %318 = vmatpush1.msra.mxu0 0.0
        %319 = vmatprep.subr.mxu0 0.0
        %320 = vmatpush1.msra.mxu0 0.0
        %321 = vmatprep.subr.mxu0 0.0
        %322 = vmatpush1.msra.mxu0 0.0
        %323 = vmatprep.subr.mxu0 0.0
        %324 = vmatpush1.msra.mxu0 0.0
        %325 = vmatprep.subr.mxu0 0.0
        %326 = vmatpush1.msra.mxu0 0.0
        %327 = vmatprep.subr.mxu0 0.0
        %328 = vmatpush1.msra.mxu0 0.0
        %329 = vmatprep.subr.mxu0 0.0
        %330 = vmatpush1.msra.mxu0 0.0
        %331 = vmatprep.subr.mxu0 0.0
        %332 = vmatpush1.msra.mxu0 0.0
        %333 = vmatprep.subr.mxu0 0.0
        %334 = vmatpush1.msra.mxu0 0.0
        %335 = vmatprep.subr.mxu0 0.0
        %336 = vmatpush1.msra.mxu0 0.0
        %337 = vmatprep.subr.mxu0 0.0
        %338 = vmatpush1.msra.mxu0 0.0
        %339 = vmatprep.subr.mxu0 0.0
        %340 = vmatpush1.msra.mxu0 0.0
        %341 = vmatprep.mubr.f32.mxu0 0.0
        %342 = vmatmul.mubr.f32.gmra.mrb[0].mxu0 %v205
        %v343 = vpop.f32.mrb[0].mxu0
        %v344 = vadd.f32 0.0, %v343
        %v345 = vpop.f32.mrb[0].mxu0
        %346 = vdwg.mxu0
        %347 = vmatprep.subr.mxu0 0.0
        %348 = vmatpush1.msra.mxu0 %v196
        %349 = vmatprep.subr.mxu0 0.0
        %350 = vmatpush1.msra.mxu0 %v197
        %351 = vmatprep.subr.mxu0 0.0
        %352 = vmatpush1.msra.mxu0 0.0
        %353 = vmatprep.subr.mxu0 0.0
        %354 = vmatpush1.msra.mxu0 0.0
        %355 = vmatprep.subr.mxu0 0.0
        %356 = vmatpush1.msra.mxu0 0.0
        %357 = vmatprep.subr.mxu0 0.0
        %358 = vmatpush1.msra.mxu0 0.0
        %359 = vmatprep.subr.mxu0 0.0
        %360 = vmatpush1.msra.mxu0 0.0
        %361 = vmatprep.subr.mxu0 0.0
        %362 = vmatpush1.msra.mxu0 0.0
        %363 = vmatprep.subr.mxu0 0.0
        %364 = vmatpush1.msra.mxu0 0.0
        %365 = vmatprep.subr.mxu0 0.0
        %366 = vmatpush1.msra.mxu0 0.0
        %367 = vmatprep.subr.mxu0 0.0
        %368 = vmatpush1.msra.mxu0 0.0
        %369 = vmatprep.subr.mxu0 0.0
        %370 = vmatpush1.msra.mxu0 0.0
        %371 = vmatprep.subr.mxu0 0.0
        %372 = vmatpush1.msra.mxu0 0.0
        %373 = vmatprep.subr.mxu0 0.0
        %374 = vmatpush1.msra.mxu0 0.0
        %375 = vmatprep.subr.mxu0 0.0
        %376 = vmatpush1.msra.mxu0 0.0
        %377 = vmatprep.subr.mxu0 0.0
        %378 = vmatpush1.msra.mxu0 0.0
        %379 = vmatprep.subr.mxu0 0.0
        %380 = vmatpush1.msra.mxu0 0.0
        %381 = vmatprep.subr.mxu0 0.0
        %382 = vmatpush1.msra.mxu0 0.0
        %383 = vmatprep.subr.mxu0 0.0
        %384 = vmatpush1.msra.mxu0 0.0
        %385 = vmatprep.subr.mxu0 0.0
        %386 = vmatpush1.msra.mxu0 0.0
        %387 = vmatprep.subr.mxu0 0.0
        %388 = vmatpush1.msra.mxu0 0.0
        %389 = vmatprep.subr.mxu0 0.0
        %390 = vmatpush1.msra.mxu0 0.0
        %391 = vmatprep.subr.mxu0 0.0
        %392 = vmatpush1.msra.mxu0 0.0
        %393 = vmatprep.subr.mxu0 0.0
        %394 = vmatpush1.msra.mxu0 0.0
        %395 = vmatprep.subr.mxu0 0.0
        %396 = vmatpush1.msra.mxu0 0.0
        %397 = vmatprep.subr.mxu0 0.0
        %398 = vmatpush1.msra.mxu0 0.0
        %399 = vmatprep.subr.mxu0 0.0
        %400 = vmatpush1.msra.mxu0 0.0
        %401 = vmatprep.subr.mxu0 0.0
        %402 = vmatpush1.msra.mxu0 0.0
        %403 = vmatprep.subr.mxu0 0.0
        %404 = vmatpush1.msra.mxu0 0.0
        %405 = vmatprep.subr.mxu0 0.0
        %406 = vmatpush1.msra.mxu0 0.0
        %407 = vmatprep.subr.mxu0 0.0
        %408 = vmatpush1.msra.mxu0 0.0
        %409 = vmatprep.subr.mxu0 0.0
        %410 = vmatpush1.msra.mxu0 0.0
        %411 = vmatprep.mubr.f32.mxu0 0.0
        %412 = vmatmul.mubr.f32.gmra.mrb[0].mxu0 %v205
        %v413 = vpop.f32.mrb[0].mxu0
        %v414 = vadd.f32 0.0, %v413
        %v415 = vpop.f32.mrb[0].mxu0
        %416 = vdwg.mxu0
        %417 = vmatprep.subr.mxu0 0.0
        %418 = vmatpush1.msra.mxu0 %v198
        %419 = vmatprep.subr.mxu0 0.0
        %420 = vmatpush1.msra.mxu0 %v199
        %421 = vmatprep.subr.mxu0 0.0
        %422 = vmatpush1.msra.mxu0 0.0
        %423 = vmatprep.subr.mxu0 0.0
        %424 = vmatpush1.msra.mxu0 0.0
        %425 = vmatprep.subr.mxu0 0.0
        %426 = vmatpush1.msra.mxu0 0.0
        %427 = vmatprep.subr.mxu0 0.0
        %428 = vmatpush1.msra.mxu0 0.0
        %429 = vmatprep.subr.mxu0 0.0
        %430 = vmatpush1.msra.mxu0 0.0
        %431 = vmatprep.subr.mxu0 0.0
        %432 = vmatpush1.msra.mxu0 0.0
        %433 = vmatprep.subr.mxu0 0.0
        %434 = vmatpush1.msra.mxu0 0.0
        %435 = vmatprep.subr.mxu0 0.0
        %436 = vmatpush1.msra.mxu0 0.0
        %437 = vmatprep.subr.mxu0 0.0
        %438 = vmatpush1.msra.mxu0 0.0
        %439 = vmatprep.subr.mxu0 0.0
        %440 = vmatpush1.msra.mxu0 0.0
        %441 = vmatprep.subr.mxu0 0.0
        %442 = vmatpush1.msra.mxu0 0.0
        %443 = vmatprep.subr.mxu0 0.0
        %444 = vmatpush1.msra.mxu0 0.0
        %445 = vmatprep.subr.mxu0 0.0
        %446 = vmatpush1.msra.mxu0 0.0
        %447 = vmatprep.subr.mxu0 0.0
        %448 = vmatpush1.msra.mxu0 0.0
        %449 = vmatprep.subr.mxu0 0.0
        %450 = vmatpush1.msra.mxu0 0.0
        %451 = vmatprep.subr.mxu0 0.0
        %452 = vmatpush1.msra.mxu0 0.0
        %453 = vmatprep.subr.mxu0 0.0
        %454 = vmatpush1.msra.mxu0 0.0
        %455 = vmatprep.subr.mxu0 0.0
        %456 = vmatpush1.msra.mxu0 0.0
        %457 = vmatprep.subr.mxu0 0.0
        %458 = vmatpush1.msra.mxu0 0.0
        %459 = vmatprep.subr.mxu0 0.0
        %460 = vmatpush1.msra.mxu0 0.0
        %461 = vmatprep.subr.mxu0 0.0
        %462 = vmatpush1.msra.mxu0 0.0
        %463 = vmatprep.subr.mxu0 0.0
        %464 = vmatpush1.msra.mxu0 0.0
        %465 = vmatprep.subr.mxu0 0.0
        %466 = vmatpush1.msra.mxu0 0.0
        %467 = vmatprep.subr.mxu0 0.0
        %468 = vmatpush1.msra.mxu0 0.0
        %469 = vmatprep.subr.mxu0 0.0
        %470 = vmatpush1.msra.mxu0 0.0
        %471 = vmatprep.subr.mxu0 0.0
        %472 = vmatpush1.msra.mxu0 0.0
        %473 = vmatprep.subr.mxu0 0.0
        %474 = vmatpush1.msra.mxu0 0.0
        %475 = vmatprep.subr.mxu0 0.0
        %476 = vmatpush1.msra.mxu0 0.0
        %477 = vmatprep.subr.mxu0 0.0
        %478 = vmatpush1.msra.mxu0 0.0
        %479 = vmatprep.subr.mxu0 0.0
        %480 = vmatpush1.msra.mxu0 0.0
        %481 = vmatprep.mubr.f32.mxu0 0.0
        %482 = vmatmul.mubr.f32.gmra.mrb[0].mxu0 %v205
        %v483 = vpop.f32.mrb[0].mxu0
        %v484 = vadd.f32 0.0, %v483
        %v485 = vpop.f32.mrb[0].mxu0
        %486 = vdwg.mxu0
        %v488 = vsel %vm203, %v274, 0
        %490 = vmatprep.subr.mxu0 0.0
        %491 = vmatpush1.msra.mxu0 %v201
        %492 = vmatprep.subr.mxu0 0.0
        %493 = vmatpush1.msra.mxu0 %v202
        %494 = vmatprep.subr.mxu0 0.0
        %495 = vmatpush1.msra.mxu0 0.0
        %496 = vmatprep.subr.mxu0 0.0
        %497 = vmatpush1.msra.mxu0 0.0
        %498 = vmatprep.subr.mxu0 0.0
        %499 = vmatpush1.msra.mxu0 0.0
        %500 = vmatprep.subr.mxu0 0.0
        %501 = vmatpush1.msra.mxu0 0.0
        %502 = vmatprep.subr.mxu0 0.0
        %503 = vmatpush1.msra.mxu0 0.0
        %504 = vmatprep.subr.mxu0 0.0
        %505 = vmatpush1.msra.mxu0 0.0
        %506 = vmatprep.subr.mxu0 0.0
        %507 = vmatpush1.msra.mxu0 0.0
        %508 = vmatprep.subr.mxu0 0.0
        %509 = vmatpush1.msra.mxu0 0.0
        %510 = vmatprep.subr.mxu0 0.0
        %511 = vmatpush1.msra.mxu0 0.0
        %512 = vmatprep.subr.mxu0 0.0
        %513 = vmatpush1.msra.mxu0 0.0
        %514 = vmatprep.subr.mxu0 0.0
        %515 = vmatpush1.msra.mxu0 0.0
        %516 = vmatprep.subr.mxu0 0.0
        %517 = vmatpush1.msra.mxu0 0.0
        %518 = vmatprep.subr.mxu0 0.0
        %519 = vmatpush1.msra.mxu0 0.0
        %520 = vmatprep.subr.mxu0 0.0
        %521 = vmatpush1.msra.mxu0 0.0
        %522 = vmatprep.subr.mxu0 0.0
        %523 = vmatpush1.msra.mxu0 0.0
        %524 = vmatprep.subr.mxu0 0.0
        %525 = vmatpush1.msra.mxu0 0.0
        %526 = vmatprep.subr.mxu0 0.0
        %527 = vmatpush1.msra.mxu0 0.0
        %528 = vmatprep.subr.mxu0 0.0
        %529 = vmatpush1.msra.mxu0 0.0
        %530 = vmatprep.subr.mxu0 0.0
        %531 = vmatpush1.msra.mxu0 0.0
        %532 = vmatprep.subr.mxu0 0.0
        %533 = vmatpush1.msra.mxu0 0.0
        %534 = vmatprep.subr.mxu0 0.0
        %535 = vmatpush1.msra.mxu0 0.0
        %536 = vmatprep.subr.mxu0 0.0
        %537 = vmatpush1.msra.mxu0 0.0
        %538 = vmatprep.subr.mxu0 0.0
        %539 = vmatpush1.msra.mxu0 0.0
        %540 = vmatprep.subr.mxu0 0.0
        %541 = vmatpush1.msra.mxu0 0.0
        %542 = vmatprep.subr.mxu0 0.0
        %543 = vmatpush1.msra.mxu0 0.0
        %544 = vmatprep.subr.mxu0 0.0
        %545 = vmatpush1.msra.mxu0 0.0
        %546 = vmatprep.subr.mxu0 0.0
        %547 = vmatpush1.msra.mxu0 0.0
        %548 = vmatprep.subr.mxu0 0.0
        %549 = vmatpush1.msra.mxu0 0.0
        %550 = vmatprep.subr.mxu0 0.0
        %551 = vmatpush1.msra.mxu0 0.0
        %552 = vmatprep.subr.mxu0 0.0
        %553 = vmatpush1.msra.mxu0 0.0
        %554 = vmatprep.mubr.f32.mxu0 0.0
        %555 = vmatmul.mubr.f32.gmra.mrb[0].mxu0 %v488
        %v556 = vpop.f32.mrb[0].mxu0
        %v557 = vadd.f32 0.0, %v556
        %v558 = vpop.f32.mrb[0].mxu0
        %559 = vdwg.mxu0
        %v561 = vsel %vm203, %v344, 0
        %563 = vmatprep.subr.mxu0 0.0
        %564 = vmatpush1.msra.mxu0 %v201
        %565 = vmatprep.subr.mxu0 0.0
        %566 = vmatpush1.msra.mxu0 %v202
        %567 = vmatprep.subr.mxu0 0.0
        %568 = vmatpush1.msra.mxu0 0.0
        %569 = vmatprep.subr.mxu0 0.0
        %570 = vmatpush1.msra.mxu0 0.0
        %571 = vmatprep.subr.mxu0 0.0
        %572 = vmatpush1.msra.mxu0 0.0
        %573 = vmatprep.subr.mxu0 0.0
        %574 = vmatpush1.msra.mxu0 0.0
        %575 = vmatprep.subr.mxu0 0.0
        %576 = vmatpush1.msra.mxu0 0.0
        %577 = vmatprep.subr.mxu0 0.0
        %578 = vmatpush1.msra.mxu0 0.0
        %579 = vmatprep.subr.mxu0 0.0
        %580 = vmatpush1.msra.mxu0 0.0
        %581 = vmatprep.subr.mxu0 0.0
        %582 = vmatpush1.msra.mxu0 0.0
        %583 = vmatprep.subr.mxu0 0.0
        %584 = vmatpush1.msra.mxu0 0.0
        %585 = vmatprep.subr.mxu0 0.0
        %586 = vmatpush1.msra.mxu0 0.0
        %587 = vmatprep.subr.mxu0 0.0
        %588 = vmatpush1.msra.mxu0 0.0
        %589 = vmatprep.subr.mxu0 0.0
        %590 = vmatpush1.msra.mxu0 0.0
        %591 = vmatprep.subr.mxu0 0.0
        %592 = vmatpush1.msra.mxu0 0.0
        %593 = vmatprep.subr.mxu0 0.0
        %594 = vmatpush1.msra.mxu0 0.0
        %595 = vmatprep.subr.mxu0 0.0
        %596 = vmatpush1.msra.mxu0 0.0
        %597 = vmatprep.subr.mxu0 0.0
        %598 = vmatpush1.msra.mxu0 0.0
        %599 = vmatprep.subr.mxu0 0.0
        %600 = vmatpush1.msra.mxu0 0.0
        %601 = vmatprep.subr.mxu0 0.0
        %602 = vmatpush1.msra.mxu0 0.0
        %603 = vmatprep.subr.mxu0 0.0
        %604 = vmatpush1.msra.mxu0 0.0
        %605 = vmatprep.subr.mxu0 0.0
        %606 = vmatpush1.msra.mxu0 0.0
        %607 = vmatprep.subr.mxu0 0.0
        %608 = vmatpush1.msra.mxu0 0.0
        %609 = vmatprep.subr.mxu0 0.0
        %610 = vmatpush1.msra.mxu0 0.0
        %611 = vmatprep.subr.mxu0 0.0
        %612 = vmatpush1.msra.mxu0 0.0
        %613 = vmatprep.subr.mxu0 0.0
        %614 = vmatpush1.msra.mxu0 0.0
        %615 = vmatprep.subr.mxu0 0.0
        %616 = vmatpush1.msra.mxu0 0.0
        %617 = vmatprep.subr.mxu0 0.0
        %618 = vmatpush1.msra.mxu0 0.0
        %619 = vmatprep.subr.mxu0 0.0
        %620 = vmatpush1.msra.mxu0 0.0
        %621 = vmatprep.subr.mxu0 0.0
        %622 = vmatpush1.msra.mxu0 0.0
        %623 = vmatprep.subr.mxu0 0.0
        %624 = vmatpush1.msra.mxu0 0.0
        %625 = vmatprep.subr.mxu0 0.0
        %626 = vmatpush1.msra.mxu0 0.0
        %627 = vmatprep.mubr.f32.mxu0 0.0
        %628 = vmatmul.mubr.f32.gmra.mrb[0].mxu0 %v561
        %v629 = vpop.f32.mrb[0].mxu0
        %v630 = vadd.f32 0.0, %v629
        %v631 = vpop.f32.mrb[0].mxu0
        %632 = vdwg.mxu0
        %v634 = vsel %vm203, %v414, 0
        %636 = vmatprep.subr.mxu0 0.0
        %637 = vmatpush1.msra.mxu0 %v201
        %638 = vmatprep.subr.mxu0 0.0
        %639 = vmatpush1.msra.mxu0 %v202
        %640 = vmatprep.subr.mxu0 0.0
        %641 = vmatpush1.msra.mxu0 0.0
        %642 = vmatprep.subr.mxu0 0.0
        %643 = vmatpush1.msra.mxu0 0.0
        %644 = vmatprep.subr.mxu0 0.0
        %645 = vmatpush1.msra.mxu0 0.0
        %646 = vmatprep.subr.mxu0 0.0
        %647 = vmatpush1.msra.mxu0 0.0
        %648 = vmatprep.subr.mxu0 0.0
        %649 = vmatpush1.msra.mxu0 0.0
        %650 = vmatprep.subr.mxu0 0.0
        %651 = vmatpush1.msra.mxu0 0.0
        %652 = vmatprep.subr.mxu0 0.0
        %653 = vmatpush1.msra.mxu0 0.0
        %654 = vmatprep.subr.mxu0 0.0
        %655 = vmatpush1.msra.mxu0 0.0
        %656 = vmatprep.subr.mxu0 0.0
        %657 = vmatpush1.msra.mxu0 0.0
        %658 = vmatprep.subr.mxu0 0.0
        %659 = vmatpush1.msra.mxu0 0.0
        %660 = vmatprep.subr.mxu0 0.0
        %661 = vmatpush1.msra.mxu0 0.0
        %662 = vmatprep.subr.mxu0 0.0
        %663 = vmatpush1.msra.mxu0 0.0
        %664 = vmatprep.subr.mxu0 0.0
        %665 = vmatpush1.msra.mxu0 0.0
        %666 = vmatprep.subr.mxu0 0.0
        %667 = vmatpush1.msra.mxu0 0.0
        %668 = vmatprep.subr.mxu0 0.0
        %669 = vmatpush1.msra.mxu0 0.0
        %670 = vmatprep.subr.mxu0 0.0
        %671 = vmatpush1.msra.mxu0 0.0
        %672 = vmatprep.subr.mxu0 0.0
        %673 = vmatpush1.msra.mxu0 0.0
        %674 = vmatprep.subr.mxu0 0.0
        %675 = vmatpush1.msra.mxu0 0.0
        %676 = vmatprep.subr.mxu0 0.0
        %677 = vmatpush1.msra.mxu0 0.0
        %678 = vmatprep.subr.mxu0 0.0
        %679 = vmatpush1.msra.mxu0 0.0
        %680 = vmatprep.subr.mxu0 0.0
        %681 = vmatpush1.msra.mxu0 0.0
        %682 = vmatprep.subr.mxu0 0.0
        %683 = vmatpush1.msra.mxu0 0.0
        %684 = vmatprep.subr.mxu0 0.0
        %685 = vmatpush1.msra.mxu0 0.0
        %686 = vmatprep.subr.mxu0 0.0
        %687 = vmatpush1.msra.mxu0 0.0
        %688 = vmatprep.subr.mxu0 0.0
        %689 = vmatpush1.msra.mxu0 0.0
        %690 = vmatprep.subr.mxu0 0.0
        %691 = vmatpush1.msra.mxu0 0.0
        %692 = vmatprep.subr.mxu0 0.0
        %693 = vmatpush1.msra.mxu0 0.0
        %694 = vmatprep.subr.mxu0 0.0
        %695 = vmatpush1.msra.mxu0 0.0
        %696 = vmatprep.subr.mxu0 0.0
        %697 = vmatpush1.msra.mxu0 0.0
        %698 = vmatprep.subr.mxu0 0.0
        %699 = vmatpush1.msra.mxu0 0.0
        %700 = vmatprep.mubr.f32.mxu0 0.0
        %701 = vmatmul.mubr.f32.gmra.mrb[0].mxu0 %v634
        %v702 = vpop.f32.mrb[0].mxu0
        %v703 = vadd.f32 0.0, %v702
        %v704 = vpop.f32.mrb[0].mxu0
        %705 = vdwg.mxu0
        %v707 = vsel %vm203, %v484, 0
        %709 = vmatprep.subr.mxu0 0.0
        %710 = vmatpush1.msra.mxu0 %v201
        %711 = vmatprep.subr.mxu0 0.0
        %712 = vmatpush1.msra.mxu0 %v202
        %713 = vmatprep.subr.mxu0 0.0
        %714 = vmatpush1.msra.mxu0 0.0
        %715 = vmatprep.subr.mxu0 0.0
        %716 = vmatpush1.msra.mxu0 0.0
        %717 = vmatprep.subr.mxu0 0.0
        %718 = vmatpush1.msra.mxu0 0.0
        %719 = vmatprep.subr.mxu0 0.0
        %720 = vmatpush1.msra.mxu0 0.0
        %721 = vmatprep.subr.mxu0 0.0
        %722 = vmatpush1.msra.mxu0 0.0
        %723 = vmatprep.subr.mxu0 0.0
        %724 = vmatpush1.msra.mxu0 0.0
        %725 = vmatprep.subr.mxu0 0.0
        %726 = vmatpush1.msra.mxu0 0.0
        %727 = vmatprep.subr.mxu0 0.0
        %728 = vmatpush1.msra.mxu0 0.0
        %729 = vmatprep.subr.mxu0 0.0
        %730 = vmatpush1.msra.mxu0 0.0
        %731 = vmatprep.subr.mxu0 0.0
        %732 = vmatpush1.msra.mxu0 0.0
        %733 = vmatprep.subr.mxu0 0.0
        %734 = vmatpush1.msra.mxu0 0.0
        %735 = vmatprep.subr.mxu0 0.0
        %736 = vmatpush1.msra.mxu0 0.0
        %737 = vmatprep.subr.mxu0 0.0
        %738 = vmatpush1.msra.mxu0 0.0
        %739 = vmatprep.subr.mxu0 0.0
        %740 = vmatpush1.msra.mxu0 0.0
        %741 = vmatprep.subr.mxu0 0.0
        %742 = vmatpush1.msra.mxu0 0.0
        %743 = vmatprep.subr.mxu0 0.0
        %744 = vmatpush1.msra.mxu0 0.0
        %745 = vmatprep.subr.mxu0 0.0
        %746 = vmatpush1.msra.mxu0 0.0
        %747 = vmatprep.subr.mxu0 0.0
        %748 = vmatpush1.msra.mxu0 0.0
        %749 = vmatprep.subr.mxu0 0.0
        %750 = vmatpush1.msra.mxu0 0.0
        %751 = vmatprep.subr.mxu0 0.0
        %752 = vmatpush1.msra.mxu0 0.0
        %753 = vmatprep.subr.mxu0 0.0
        %754 = vmatpush1.msra.mxu0 0.0
        %755 = vmatprep.subr.mxu0 0.0
        %756 = vmatpush1.msra.mxu0 0.0
        %757 = vmatprep.subr.mxu0 0.0
        %758 = vmatpush1.msra.mxu0 0.0
        %759 = vmatprep.subr.mxu0 0.0
        %760 = vmatpush1.msra.mxu0 0.0
        %761 = vmatprep.subr.mxu0 0.0
        %762 = vmatpush1.msra.mxu0 0.0
        %763 = vmatprep.subr.mxu0 0.0
        %764 = vmatpush1.msra.mxu0 0.0
        %765 = vmatprep.subr.mxu0 0.0
        %766 = vmatpush1.msra.mxu0 0.0
        %767 = vmatprep.subr.mxu0 0.0
        %768 = vmatpush1.msra.mxu0 0.0
        %769 = vmatprep.subr.mxu0 0.0
        %770 = vmatpush1.msra.mxu0 0.0
        %771 = vmatprep.subr.mxu0 0.0
        %772 = vmatpush1.msra.mxu0 0.0
        %773 = vmatprep.mubr.f32.mxu0 0.0
        %774 = vmatmul.mubr.f32.gmra.mrb[0].mxu0 %v707
        %v775 = vpop.f32.mrb[0].mxu0
        %v776 = vadd.f32 0.0, %v775
        %v777 = vpop.f32.mrb[0].mxu0
        %778 = vdwg.mxu0
        %vm779 = vcmask 64512
        %780 = vst.msk [vmem:[%s189] sm:$0xff] %vm779, %v557
        %781 = vst.msk [vmem:[%s189 + $0x8] sm:$0xff] %vm779, %v630
        %782 = vst.msk [vmem:[%s189 + $0x10] sm:$0xff] %vm779, %v703
        %783 = vst.msk [vmem:[%s189 + $0x18] sm:$0xff] %vm779, %v776
        %s784 = sand.u32 %s96, 1
        %s785 = scalar_lea.sflag [#allocation4], %s784
        %s786 = sand.u32 %s96, 1
        %s787 = smul.addr %s786, 32
        %s788 = scalar_lea.vmem [#allocation5], %s787
        // Predicated region
        $region37: #{tpu_custom_call.1} parent=31 // pred_check
          %p789 = pneg %p106
        $region38: #{tpu_custom_call.1} parent=31 // pred_check_branch
          %791 = sbr.rel (%p789) target = $region40
        $region39: #{tpu_custom_call.1} parent=31 // pred_region
          %s792 = smul.u32 4, %s20
          %s794 = ssub.s32 512, 512
          %795 = vsyncadd %s785, %s794
          %s796 = smul.addr %s792, 128
          %s797 = scalar_lea.hbm %s3, %s796
          %s798 = sshll.u32 %s788, 4
          %s799 = int_to_ptr.vmem [resolvable:$true] %s798
          %804 = dma.vmem_to_hbm [thread:$0]  %s799, 512, %s797, %s785, 128, 128, 8
        $region40: #{tpu_custom_call.1} parent=31 // pred_fallthru
          _
      $region32: #{tpu_custom_call.1} parent=5 // pred_fallthru
        _
      %p805 = scmp.le.s32.totalorder 2, %s15
      // Predicated region
      $region41: #{tpu_custom_call.1} parent=5 // pred_check
        %p806 = pneg %p805
      $region42: #{tpu_custom_call.1} parent=5 // pred_check_branch
        %808 = sbr.rel (%p806) target = $region44
      $region43: #{tpu_custom_call.1} parent=5 // pred_region
        %s809 = ssub.s32 %s15, 2
        // Predicated region
        $region45: #{tpu_custom_call.1} parent=43 // pred_check
          %p810 = pneg %p112
        $region46: #{tpu_custom_call.1} parent=43 // pred_check_branch
          %812 = sbr.rel (%p810) target = $region48
        $region47: #{tpu_custom_call.1} parent=43 // pred_region
          %s813 = sand.u32 %s97, 1
          %s814 = scalar_lea.sflag [#allocation4], %s813
          %s815 = sand.u32 %s97, 1
          %s816 = smul.addr %s815, 32
          %s817 = scalar_lea.vmem [#allocation5], %s816
          %818 = dma.done %s814, 512
        $region48: #{tpu_custom_call.1} parent=43 // pred_fallthru
          _
      $region44: #{tpu_custom_call.1} parent=5 // pred_fallthru
        _
    $region6: #{tpu_custom_call.1} parent=1 // loop_footer
      %s19 = sadd.s32 1, %s15
    $region7: #{tpu_custom_call.1} parent=1 // loop_footer_branch
      %14 = sbr.rel target = $region3
    $region8: #{tpu_custom_call.1} parent=1 // loop_exit
      _
    %819 = vsyncpa [#allocation3], 1
    %s820 = scalar_lea.sflag [#allocation3], 1
    %821 = vsyncpa %s820, 1
    %822 = vsyncpa [#allocation4], 1
    %s823 = scalar_lea.sflag [#allocation4], 1
    %824 = vsyncpa %s823, 1

</llo_original>
